<compile_context>
chip_gen: v7x
topology: tpu7x:2x2x1
jax: 0.10.0
libtpu: 0.0.40
codegen_flags: <defaults>
</compile_context>

<pallas_src>
import functools
import math

import jax
import jax.numpy as jnp
import numpy as np
from jax.experimental import pallas as pl
from jax.experimental.pallas import tpu as pltpu

LANE = 128
_SMALL_ELEMS = 1 << 14  # below this, skip Pallas: custom-call overhead > data time


# ----------------------------------------------------------------------------
# Kernel: per-tile masked fill.  mask row is resident (same block every step).
# ----------------------------------------------------------------------------
def _bitmask_kernel(constant, m_ref, z_ref, o_ref):
    """m_ref: VMEM (1, W) 0/1 in z dtype; z_ref/o_ref: VMEM (TB, W)."""
    z = z_ref[...]
    hit = m_ref[...] != 0  # (1, W) bool, broadcast over rows
    o_ref[...] = jnp.where(hit, jnp.asarray(constant, dtype=z.dtype), z)


# ----------------------------------------------------------------------------
# Tiling helpers
# ----------------------------------------------------------------------------
@functools.lru_cache(maxsize=1)
def _vmem_budget():
    """(block_target_bytes, vmem_limit_bytes), generation-aware."""
    try:
        vmem_cap = int(getattr(pltpu.get_tpu_info(), "vmem_capacity_bytes", 0))
    except Exception:
        vmem_cap = 0
    if vmem_cap >= 100 * 1024 * 1024:  # v5e / v6e: 128 MiB physical VMEM
        return 8 * 1024 * 1024, 64 * 1024 * 1024
    # v7x (64 MiB VMEM) or unknown: stay conservative. In+out double-buffering
    # is ~4x the block size, so 4 MiB blocks keep us well inside 32 MiB scoped.
    return 4 * 1024 * 1024, 32 * 1024 * 1024


def _sublane_multiple(dtype):
    # f32 -> 8, bf16 -> 16, int8/fp8 -> 32 rows per packed sublane tile.
    itemsize = jnp.dtype(dtype).itemsize
    return max(8, 32 // max(itemsize, 1))


def _pick_row_tile(n_rows, n_cols, dtype, block_target_bytes):
    """Rows per block: sublane-aligned, ~block_target_bytes per block."""
    sub = _sublane_multiple(dtype)
    itemsize = jnp.dtype(dtype).itemsize
    rows = block_target_bytes // max(n_cols * itemsize, 1)
    rows = max(sub, (rows // sub) * sub)
    if n_rows <= rows:
        # Whole array fits one block: still split into >=2 tiles when possible so
        # v7x's two TensorCores both get work (harmless ~0.35us/step elsewhere).
        if n_rows >= 2 * sub:
            half = ((n_rows + 1) // 2 + sub - 1) // sub * sub
            return min(half, n_rows)
        return n_rows  # full-dim block is always legal
    return rows


def _masked_fill_2d(z2d, mask_row, constant):
    """z2d: (R, W), mask_row: (1, W) 0/1 in z dtype. Row-tiled select."""
    R, W = z2d.shape
    block_target, vmem_limit = _vmem_budget()
    tb = _pick_row_tile(R, W, z2d.dtype, block_target)
    grid = (pl.cdiv(R, tb),)
    kernel = functools.partial(_bitmask_kernel, float(constant))
    return pl.pallas_call(
        kernel,
        out_shape=jax.ShapeDtypeStruct((R, W), z2d.dtype),
        grid_spec=pltpu.PrefetchScalarGridSpec(
            num_scalar_prefetch=0,
            grid=grid,
            in_specs=[
                pl.BlockSpec((1, W), lambda i: (0, 0)),    # mask row (resident)
                pl.BlockSpec((tb, W), lambda i: (i, 0)),   # z row tile
            ],
            out_specs=pl.BlockSpec((tb, W), lambda i: (i, 0)),
        ),
        compiler_params=pltpu.CompilerParams(
            dimension_semantics=("parallel",),  # row tiles are independent
            vmem_limit_bytes=vmem_limit,
        ),
    )(mask_row, z2d)


# ----------------------------------------------------------------------------
# Routing: tiny bypass / lane-dense repack / fallback
# ----------------------------------------------------------------------------
def _widen_mask(mask_row, z_dim):
    """Widen (1, z_dim) mask to (1, W) with W = lcm(z_dim, 128) (lane-dense rows)."""
    if z_dim % LANE == 0:
        return mask_row, z_dim
    W = (z_dim * LANE) // math.gcd(z_dim, LANE)
    return jnp.tile(mask_row, (1, W // z_dim)), W


def _apply_bitmask(z, mask_row, mask_wide, wide_cols, constant,
                   small_elems=_SMALL_ELEMS):
    B, Z = z.shape
    if B * Z < small_elems:
        # Tiny input: a fused XLA select beats custom-call + pipeline overhead.
        return jnp.where(mask_row.astype(z.dtype) != 0,
                         jnp.asarray(constant, dtype=z.dtype), z)
    if (B * Z) % wide_cols == 0:
        # Lane-dense repack: (B, Z) -> (B*Z/W, W), W a multiple of 128; the
        # row-major flatten repeats the mask pattern every Z lanes.
        out = _masked_fill_2d(z.reshape(-1, wide_cols),
                              mask_wide.astype(z.dtype), constant)
        return out.reshape(B, Z)
    # TODO(synk): this fallback (last dim not a 128 multiple) hits masked partial
    # stores; a pad-to-128 path would recover full store bandwidth if it matters.
    return _masked_fill_2d(z, mask_row.astype(z.dtype), constant)


def random_bit_mask_forward(z, mask_idx, constant):
    """Functional form: z (B, z_dim), mask_idx n_bit indices, constant scalar."""
    B, Z = z.shape
    idx = jnp.asarray(mask_idx, jnp.int32).reshape(-1)
    row = jnp.zeros((1, Z), jnp.float32).at[0, idx].set(1.0)
    wide, W = _widen_mask(row, Z)
    return _apply_bitmask(z, row, wide, W, constant)


# ----------------------------------------------------------------------------
# Module mirror of the PyTorch RandomBitMask
# ----------------------------------------------------------------------------
class RandomBitMaskJAX:
    """Holds n_bit / constant / z_dim and the (cached) mask buffers."""

    def __init__(self, n_bit, constant, z_dim, key):
        self.n = n_bit
        self.c = constant
        self.z_dim = z_dim
        self._key = key
        self.reset()

    def reset(self):
        # torch.randperm(z_dim)[:n] -> n distinct random indices.
        self._key, sub = jax.random.split(self._key)
        perm = jax.random.permutation(sub, self.z_dim)
        self._mask = perm[: self.n].reshape(1, self.n).astype(jnp.int32)
        # Cache the dense 0/1 row and its lane-widened variant: the steady-state
        # forward does no scatter/tile work.
        row = jnp.zeros((1, self.z_dim), jnp.float32).at[0, self._mask[0]].set(1.0)
        self._mask_row = row
        self._mask_wide, self._wide_cols = _widen_mask(row, self.z_dim)

    @property
    def mask(self):
        return self._mask

    def __call__(self, z):
        assert z.ndim == 2 and z.shape[1] == self.z_dim
        return _apply_bitmask(z, self._mask_row, self._mask_wide,
                              self._wide_cols, self.c)


if __name__ == "__main__":
    CONST = 1.5
    key = jax.random.PRNGKey(0)
    k_mod, k1, k2, k3 = jax.random.split(key, 4)

    def check(module, z):
        ref = np.asarray(z).copy()
        ref[:, np.asarray(module.mask[0])] = CONST
        out = jax.block_until_ready(module(z))
        np.testing.assert_allclose(np.asarray(out), ref, rtol=0, atol=0)

    # 1) Tiny, module-consistent shapes (batch=4, z_dim=32): XLA-select bypass path.
    m1 = RandomBitMaskJAX(n_bit=8, constant=CONST, z_dim=32, key=k_mod)
    check(m1, jax.random.normal(k1, (4, 32), jnp.float32))

    # 2) Lane-dense repack path through the Pallas kernel:
    #    z_dim=48 -> W=lcm(48,128)=384, (2048,48) -> (256,384).
    m2 = RandomBitMaskJAX(n_bit=12, constant=CONST, z_dim=48, key=k_mod)
    check(m2, jax.random.normal(k2, (2048, 48), jnp.float32))

    # 3) Non-repackable fallback through the Pallas kernel (z_dim=200, B=100).
    m3 = RandomBitMaskJAX(n_bit=16, constant=CONST, z_dim=200, key=k_mod)
    check(m3, jax.random.normal(k3, (100, 200), jnp.float32))

    print("KERNEL_OK")
</pallas_src>

<mosaic_0001>
module attributes {stable_mosaic.version = 11 : i64} {
  func.func @_bitmask_kernel(%arg0: i32, %arg1: memref<1x384xf32, #tpu.memory_space<vmem>>, %arg2: memref<128x384xf32, #tpu.memory_space<vmem>>, %arg3: memref<128x384xf32, #tpu.memory_space<vmem>>) attributes {dimension_semantics = [#tpu.dimension_semantics<parallel>], iteration_bounds = array<i64: 2>, scalar_prefetch = 0 : i64, scratch_operands = 0 : i64, tpu.core_type = #tpu.core_type<tc>, window_params = [{pipeline_mode = #tpu.pipeline_mode<synchronous>, transform_indices = @transform_0, window_bounds = array<i64: 1, 384>}, {transform_indices = @transform_1, window_bounds = array<i64: 128, 384>}, {transform_indices = @transform_2, window_bounds = array<i64: 128, 384>}]} {
    %c0 = arith.constant 0 : index
    %c0_0 = arith.constant 0 : index
    %0 = vector.load %arg2[%c0, %c0_0] : memref<128x384xf32, #tpu.memory_space<vmem>>, vector<128x384xf32>
    %c0_1 = arith.constant 0 : index
    %c0_2 = arith.constant 0 : index
    %1 = vector.load %arg1[%c0_1, %c0_2] : memref<1x384xf32, #tpu.memory_space<vmem>>, vector<1x384xf32>
    %cst = arith.constant 0.000000e+00 : f32
    %2 = vector.broadcast %cst : f32 to vector<1x384xf32>
    %3 = arith.cmpf one, %1, %2 : vector<1x384xf32>
    %cst_3 = arith.constant 1.500000e+00 : f32
    %4 = vector.shape_cast %3 : vector<1x384xi1> to vector<1x384xi1>
    %5 = vector.broadcast %4 : vector<1x384xi1> to vector<128x384xi1>
    %6 = vector.broadcast %cst_3 : f32 to vector<128x384xf32>
    %7 = arith.select %5, %6, %0 : vector<128x384xi1>, vector<128x384xf32>
    %c0_4 = arith.constant 0 : index
    %c0_5 = arith.constant 0 : index
    %8 = vector.load %arg3[%c0_4, %c0_5] : memref<128x384xf32, #tpu.memory_space<vmem>>, vector<128x384xf32>
    tpu.vector_store %arg3[%c0_4, %c0_5], %7 {strides = array<i32>} : memref<128x384xf32, #tpu.memory_space<vmem>>, vector<128x384xf32>,
    return
  }
  func.func @transform_0(%arg0: i32) -> (i32, i32) {
    %c0_i32 = arith.constant 0 : i32
    %c0_i32_0 = arith.constant 0 : i32
    %c0_i32_1 = arith.constant 0 : i32
    return %c0_i32, %c0_i32_0 : i32, i32
  }
  func.func @transform_1(%arg0: i32) -> (i32, i32) {
    %c0_i32 = arith.constant 0 : i32
    %c0_i32_0 = arith.constant 0 : i32
    return %arg0, %c0_i32 : i32, i32
  }
  func.func @transform_2(%arg0: i32) -> (i32, i32) {
    %c0_i32 = arith.constant 0 : i32
    %c0_i32_0 = arith.constant 0 : i32
    return %arg0, %c0_i32 : i32, i32
  }
}

</mosaic_0001>

<llo_original>
// kernel: tpu_custom_call.1
$region0: #{tpu_custom_call.1}
  #allocation0 [shape = 'u32[]', space=smem, size = 0x4, offset = 0x4, fixed_abs, tag = 'smem constant byte address 0x4 - core index']
  #allocation1 [shape = 'u32[144,128]{1,0:T(1,128)}', space=vmem, size = 0x12000, scoped, tag = 'internal scratch']
  %s0 = inlined_call_operand.hbm [shape: f32[1,384], index: 0, kind: input, shape index: {}]
  %s1 = inlined_call_operand.hbm [shape: f32[256,384], index: 1, kind: input, shape index: {}]
  %s2 = inlined_call_operand.hbm [shape: f32[256,384], index: 2, kind: output, shape index: {}]
  %s3 = sld [smem:[#allocation0]]
  $region49: #{tpu_custom_call.1} parent=0
    _
  %s5 = ssub.s32 1, %s3
  %s6 = scalar_select 0, %s5, %s3
  $region1: #{tpu_custom_call.1} parent=0
    #allocation2 [shape = 'u8[1536]{0}', space=vmem, size = 0x800, scoped, tag = 'input window, operand 0, single buffered']
    #allocation3 [shape = 's32[2]{0}', space=sflag, size = 0x8, scoped, tag = 'scoped memory for tpu_custom_call.1']
    #allocation4 [shape = 's32[2]{0}', space=sflag, size = 0x8, scoped, tag = 'scoped memory for tpu_custom_call.1']
    #allocation5 [shape = 'u8[393216]{0}', space=vmem, size = 0x60000, scoped, tag = 'input window, operand 1']
    #allocation6 [shape = 's32[2]{0}', space=sflag, size = 0x8, scoped, tag = 'scoped memory for tpu_custom_call.1']
    #allocation7 [shape = 'u8[393216]{0}', space=vmem, size = 0x60000, scoped, tag = 'output window, operand 0']
    %7 = vsyncpa [#allocation3], 0
    %8 = vsyncpa [#allocation6], 0
    %s9 = scalar_lea.sflag [#allocation6], 1
    %10 = vsyncpa %s9, 0
    %11 = vsyncpa [#allocation4], 0
    %s12 = scalar_lea.sflag [#allocation4], 1
    %13 = vsyncpa %s12, 0
    loop: start=0, step=1, limit=4
    $region2: #{tpu_custom_call.1} parent=1 // loop_pre_header
      _
    $region3: #{tpu_custom_call.1} parent=1 // loop_header
      %s15 = sphi 0, %s19
      %p16 = scmp.ge.s32.totalorder %s15, 4
      %s23 = sphi 0, %s23
      %s25 = sphi 0, %s23
      %s26 = sphi 0, %s25
      %s40 = sphi 0, %s26
      %s46 = sphi 0, %s48
      %s49 = sphi 0, %s46
      %s50 = sphi 0, %s49
      %s66 = sphi 0, %s50
      %s72 = sphi 0, %s74
      %s75 = sphi 0, %s72
      %s76 = sphi 0, %s75
      %s92 = sphi 0, %s76
    $region4: #{tpu_custom_call.1} parent=1 // loop_header_branch
      %18 = sbr.rel (%p16) target = $region8
    $region5: #{tpu_custom_call.1} parent=1 // loop_body
      %s20 = ssub.s32 %s15, 1
      %s21 = ssub.s32 %s15, 2
      %s22 = sadd.s32 %s15, 1
      %s24 = sadd.s32 %s23, 1
      %p27 = scmp.eq.s32.totalorder %s15, 1
      %p28 = scmp.ne.s32.totalorder %s23, %s25
      %p29 = scmp.eq.s32.totalorder %s15, 0
      %p30 = por %p28, %p29
      %p31 = scmp.ne.s32.totalorder %s23, %s25
      %p32 = scmp.eq.s32.totalorder %s20, 1
      %p33 = por %p31, %p32
      %p34 = scmp.ne.s32.totalorder %s25, %s26
      %p35 = scmp.eq.s32.totalorder %s20, 0
      %p36 = por %p34, %p35
      %p37 = scmp.ne.s32.totalorder %s25, %s26
      %p38 = scmp.eq.s32.totalorder %s21, 1
      %p39 = por %p37, %p38
      %p41 = scmp.ne.s32.totalorder %s26, %s40
      %p42 = scmp.eq.s32.totalorder %s21, 0
      %p43 = por %p41, %p42
      %s44 = ssub.s32 %s15, %s22
      %p45 = scmp.eq.s32.totalorder %s44, 0
      %s47 = sadd.s32 %s46, 1
      %s48 = scalar_select %p45, %s46, %s47
      %p51 = pneg %p45
      %p52 = scmp.eq.s32.totalorder %s15, 1
      %p53 = por %p51, %p52
      %p54 = scmp.ne.s32.totalorder %s46, %s49
      %p55 = scmp.eq.s32.totalorder %s15, 0
      %p56 = por %p54, %p55
      %p57 = scmp.ne.s32.totalorder %s46, %s49
      %p58 = scmp.eq.s32.totalorder %s20, 1
      %p59 = por %p57, %p58
      %p60 = scmp.ne.s32.totalorder %s49, %s50
      %p61 = scmp.eq.s32.totalorder %s20, 0
      %p62 = por %p60, %p61
      %p63 = scmp.ne.s32.totalorder %s49, %s50
      %p64 = scmp.eq.s32.totalorder %s21, 1
      %p65 = por %p63, %p64
      %p67 = scmp.ne.s32.totalorder %s50, %s66
      %p68 = scmp.eq.s32.totalorder %s21, 0
      %p69 = por %p67, %p68
      %s70 = ssub.s32 %s15, %s22
      %p71 = scmp.eq.s32.totalorder %s70, 0
      %s73 = sadd.s32 %s72, 1
      %s74 = scalar_select %p71, %s72, %s73
      %p77 = pneg %p71
      %p78 = scmp.eq.s32.totalorder %s15, 1
      %p79 = por %p77, %p78
      %p80 = scmp.ne.s32.totalorder %s72, %s75
      %p81 = scmp.eq.s32.totalorder %s15, 0
      %p82 = por %p80, %p81
      %p83 = scmp.ne.s32.totalorder %s72, %s75
      %p84 = scmp.eq.s32.totalorder %s20, 1
      %p85 = por %p83, %p84
      %p86 = scmp.ne.s32.totalorder %s75, %s76
      %p87 = scmp.eq.s32.totalorder %s20, 0
      %p88 = por %p86, %p87
      %p89 = scmp.ne.s32.totalorder %s75, %s76
      %p90 = scmp.eq.s32.totalorder %s21, 1
      %p91 = por %p89, %p90
      %p93 = scmp.ne.s32.totalorder %s76, %s92
      %p94 = scmp.eq.s32.totalorder %s21, 0
      %p95 = por %p93, %p94
      %p96 = scmp.le.s32.totalorder 1, %s15
      %p97 = scmp.lt.s32.totalorder %s15, 3
      %p98 = pnand %p96, %p97
      %p99 = pneg %p98
      // Predicated region
      $region9: #{tpu_custom_call.1} parent=5 // pred_check
        _
      $region10: #{tpu_custom_call.1} parent=5 // pred_check_branch
        %101 = sbr.rel (%p98) target = $region12
      $region11: #{tpu_custom_call.1} parent=5 // pred_region
        %s102 = ssub.s32 %s15, 1
        // Predicated region
        $region13: #{tpu_custom_call.1} parent=11 // pred_check
          %p103 = pneg %p36
        $region14: #{tpu_custom_call.1} parent=11 // pred_check_branch
          %105 = sbr.rel (%p103) target = $region16
        $region15: #{tpu_custom_call.1} parent=11 // pred_region
          %s107 = ssub.s32 48, 48
          %108 = vsyncadd [#allocation3], %s107
          %s110 = sshll.u32 [#allocation2], 4
          %s111 = int_to_ptr.vmem [resolvable:$true] %s110
          %113 = dma.hbm_to_vmem [thread:$0]  %s0, 48, %s111, [#allocation3]
        $region16: #{tpu_custom_call.1} parent=11 // pred_fallthru
          _
      $region12: #{tpu_custom_call.1} parent=5 // pred_fallthru
        _
      %p114 = scmp.lt.s32.totalorder %s15, 2
      // Predicated region
      $region17: #{tpu_custom_call.1} parent=5 // pred_check
        %p115 = pneg %p114
      $region18: #{tpu_custom_call.1} parent=5 // pred_check_branch
        %117 = sbr.rel (%p115) target = $region20
      $region19: #{tpu_custom_call.1} parent=5 // pred_region
        // Predicated region
        $region21: #{tpu_custom_call.1} parent=19 // pred_check
          %p118 = pneg %p56
        $region22: #{tpu_custom_call.1} parent=19 // pred_check_branch
          %120 = sbr.rel (%p118) target = $region24
        $region23: #{tpu_custom_call.1} parent=19 // pred_region
          %s121 = sand.u32 %s46, 1
          %s122 = scalar_lea.sflag [#allocation6], %s121
          %s123 = sand.u32 %s46, 1
          %s124 = smul.addr %s123, 384
          %s125 = scalar_lea.vmem [#allocation5], %s124
          %s126 = smul.u32 16, %s15
          %s128 = ssub.s32 6144, 6144
          %129 = vsyncadd %s122, %s128
          %s130 = smul.addr %s126, 3
          %s131 = smul.addr %s130, 128
          %s132 = scalar_lea.hbm %s1, %s131
          %s133 = sshll.u32 %s125, 4
          %s134 = int_to_ptr.vmem [resolvable:$true] %s133
          %139 = dma.hbm_to_vmem [thread:$0]  %s132, 6144, %s134, %s122, 384, 384, 24
        $region24: #{tpu_custom_call.1} parent=19 // pred_fallthru
          _
      $region20: #{tpu_custom_call.1} parent=5 // pred_fallthru
        _
      %p140 = scmp.le.s32.totalorder 1, %s15
      %p141 = scmp.lt.s32.totalorder %s15, 3
      %p142 = pnand %p140, %p141
      %p143 = pneg %p142
      // Predicated region
      $region25: #{tpu_custom_call.1} parent=5 // pred_check
        _
      $region26: #{tpu_custom_call.1} parent=5 // pred_check_branch
        %145 = sbr.rel (%p142) target = $region28
      $region27: #{tpu_custom_call.1} parent=5 // pred_region
        %s146 = ssub.s32 %s15, 1
        // Predicated region
        $region29: #{tpu_custom_call.1} parent=27 // pred_check
          %p147 = pneg %p36
        $region30: #{tpu_custom_call.1} parent=27 // pred_check_branch
          %149 = sbr.rel (%p147) target = $region32
        $region31: #{tpu_custom_call.1} parent=27 // pred_region
          %150 = dma.done [#allocation3], 48
        $region32: #{tpu_custom_call.1} parent=27 // pred_fallthru
          _
        %s151 = sand.u32 %s49, 1
        %s152 = scalar_lea.sflag [#allocation6], %s151
        %s153 = sand.u32 %s49, 1
        %s154 = smul.addr %s153, 384
        %s155 = scalar_lea.vmem [#allocation5], %s154
        // Predicated region
        $region33: #{tpu_custom_call.1} parent=27 // pred_check
          %p156 = pneg %p62
        $region34: #{tpu_custom_call.1} parent=27 // pred_check_branch
          %158 = sbr.rel (%p156) target = $region36
        $region35: #{tpu_custom_call.1} parent=27 // pred_region
          %159 = dma.done %s152, 6144
        $region36: #{tpu_custom_call.1} parent=27 // pred_fallthru
          _
        %p160 = pneg %p36
        %p161 = pneg %p33
        %s162 = sand.u32 %s49, 1
        %s163 = scalar_lea.sflag [#allocation6], %s162
        %s164 = sand.u32 %s49, 1
        %s165 = smul.addr %s164, 384
        %s166 = scalar_lea.vmem [#allocation5], %s165
        %p167 = pneg %p62
        %p168 = pneg %p59
        %p169 = pneg %p88
        %p170 = pneg %p85
        %s171 = sand.u32 %s75, 1
        %s172 = scalar_lea.sflag [#allocation4], %s171
        %s173 = sand.u32 %s75, 1
        %s174 = smul.addr %s173, 384
        %s175 = scalar_lea.vmem [#allocation7], %s174
        %s176 = smul.u32 16, %s20
        %s177 = smul.u32 16, %s20
        %v178 = vld [vmem:[%s155] sm:$0xff]
        %v179 = vld [vmem:[%s155 + $0x8] sm:$0xff]
        %v180 = vld [vmem:[%s155 + $0x10] sm:$0xff]
        %v181 = vld [vmem:[%s155 + $0x18] sm:$0xff]
        %v182 = vld [vmem:[%s155 + $0x20] sm:$0xff]
        %v183 = vld [vmem:[%s155 + $0x28] sm:$0xff]
        %v184 = vld [vmem:[%s155 + $0x30] sm:$0xff]
        %v185 = vld [vmem:[%s155 + $0x38] sm:$0xff]
        %v186 = vld [vmem:[%s155 + $0x40] sm:$0xff]
        %v187 = vld [vmem:[%s155 + $0x48] sm:$0xff]
        %v188 = vld [vmem:[%s155 + $0x50] sm:$0xff]
        %v189 = vld [vmem:[%s155 + $0x58] sm:$0xff]
        %v190 = vld [vmem:[%s155 + $0x60] sm:$0xff]
        %v191 = vld [vmem:[%s155 + $0x68] sm:$0xff]
        %v192 = vld [vmem:[%s155 + $0x70] sm:$0xff]
        %v193 = vld [vmem:[%s155 + $0x78] sm:$0xff]
        %v194 = vld [vmem:[%s155 + $0x80] sm:$0xff]
        %v195 = vld [vmem:[%s155 + $0x88] sm:$0xff]
        %v196 = vld [vmem:[%s155 + $0x90] sm:$0xff]
        %v197 = vld [vmem:[%s155 + $0x98] sm:$0xff]
        %v198 = vld [vmem:[%s155 + $0xa0] sm:$0xff]
        %v199 = vld [vmem:[%s155 + $0xa8] sm:$0xff]
        %v200 = vld [vmem:[%s155 + $0xb0] sm:$0xff]
        %v201 = vld [vmem:[%s155 + $0xb8] sm:$0xff]
        %v202 = vld [vmem:[%s155 + $0xc0] sm:$0xff]
        %v203 = vld [vmem:[%s155 + $0xc8] sm:$0xff]
        %v204 = vld [vmem:[%s155 + $0xd0] sm:$0xff]
        %v205 = vld [vmem:[%s155 + $0xd8] sm:$0xff]
        %v206 = vld [vmem:[%s155 + $0xe0] sm:$0xff]
        %v207 = vld [vmem:[%s155 + $0xe8] sm:$0xff]
        %v208 = vld [vmem:[%s155 + $0xf0] sm:$0xff]
        %v209 = vld [vmem:[%s155 + $0xf8] sm:$0xff]
        %v210 = vld [vmem:[%s155 + $0x100] sm:$0xff]
        %v211 = vld [vmem:[%s155 + $0x108] sm:$0xff]
        %v212 = vld [vmem:[%s155 + $0x110] sm:$0xff]
        %v213 = vld [vmem:[%s155 + $0x118] sm:$0xff]
        %v214 = vld [vmem:[%s155 + $0x120] sm:$0xff]
        %v215 = vld [vmem:[%s155 + $0x128] sm:$0xff]
        %v216 = vld [vmem:[%s155 + $0x130] sm:$0xff]
        %v217 = vld [vmem:[%s155 + $0x138] sm:$0xff]
        %v218 = vld [vmem:[%s155 + $0x140] sm:$0xff]
        %v219 = vld [vmem:[%s155 + $0x148] sm:$0xff]
        %v220 = vld [vmem:[%s155 + $0x150] sm:$0xff]
        %v221 = vld [vmem:[%s155 + $0x158] sm:$0xff]
        %v222 = vld [vmem:[%s155 + $0x160] sm:$0xff]
        %v223 = vld [vmem:[%s155 + $0x168] sm:$0xff]
        %v224 = vld [vmem:[%s155 + $0x170] sm:$0xff]
        %v225 = vld [vmem:[%s155 + $0x178] sm:$0xff]
        %v226 = vld [vmem:[#allocation2] sm:$0x7]
        %vm227 = vcmp.ne.f32.partialorder %v226, 0.0
        %v228 = vsel %vm227, 1, 0
        %v229 = vlaneseq
        %v230 = vshrl.u32 %v229, 7
        %v231 = vsub.s32 0, %v230
        %v232 = vrot.slane %v228, %v231
        %v233 = vlaneseq
        %v234 = vshrl.u32 %v233, 7
        %v235 = vsub.s32 1, %v234
        %v236 = vrot.slane %v228, %v235
        %v237 = vlaneseq
        %v238 = vshrl.u32 %v237, 7
        %v239 = vsub.s32 2, %v238
        %v240 = vrot.slane %v228, %v239
        %vm241 = vcmp.eq.s32.totalorder %v232, 1
        %vm242 = vcmp.eq.s32.totalorder %v236, 1
        %vm243 = vcmp.eq.s32.totalorder %v240, 1
        %v244 = vsel %vm241, 1.5, %v178
        %v245 = vsel %vm242, 1.5, %v179
        %v246 = vsel %vm243, 1.5, %v180
        %v247 = vsel %vm241, 1.5, %v181
        %v248 = vsel %vm242, 1.5, %v182
        %v249 = vsel %vm243, 1.5, %v183
        %v250 = vsel %vm241, 1.5, %v184
        %v251 = vsel %vm242, 1.5, %v185
        %v252 = vsel %vm243, 1.5, %v186
        %v253 = vsel %vm241, 1.5, %v187
        %v254 = vsel %vm242, 1.5, %v188
        %v255 = vsel %vm243, 1.5, %v189
        %v256 = vsel %vm241, 1.5, %v190
        %v257 = vsel %vm242, 1.5, %v191
        %v258 = vsel %vm243, 1.5, %v192
        %v259 = vsel %vm241, 1.5, %v193
        %v260 = vsel %vm242, 1.5, %v194
        %v261 = vsel %vm243, 1.5, %v195
        %v262 = vsel %vm241, 1.5, %v196
        %v263 = vsel %vm242, 1.5, %v197
        %v264 = vsel %vm243, 1.5, %v198
        %v265 = vsel %vm241, 1.5, %v199
        %v266 = vsel %vm242, 1.5, %v200
        %v267 = vsel %vm243, 1.5, %v201
        %v268 = vsel %vm241, 1.5, %v202
        %v269 = vsel %vm242, 1.5, %v203
        %v270 = vsel %vm243, 1.5, %v204
        %v271 = vsel %vm241, 1.5, %v205
        %v272 = vsel %vm242, 1.5, %v206
        %v273 = vsel %vm243, 1.5, %v207
        %v274 = vsel %vm241, 1.5, %v208
        %v275 = vsel %vm242, 1.5, %v209
        %v276 = vsel %vm243, 1.5, %v210
        %v277 = vsel %vm241, 1.5, %v211
        %v278 = vsel %vm242, 1.5, %v212
        %v279 = vsel %vm243, 1.5, %v213
        %v280 = vsel %vm241, 1.5, %v214
        %v281 = vsel %vm242, 1.5, %v215
        %v282 = vsel %vm243, 1.5, %v216
        %v283 = vsel %vm241, 1.5, %v217
        %v284 = vsel %vm242, 1.5, %v218
        %v285 = vsel %vm243, 1.5, %v219
        %v286 = vsel %vm241, 1.5, %v220
        %v287 = vsel %vm242, 1.5, %v221
        %v288 = vsel %vm243, 1.5, %v222
        %v289 = vsel %vm241, 1.5, %v223
        %v290 = vsel %vm242, 1.5, %v224
        %v291 = vsel %vm243, 1.5, %v225
        %292 = vst [vmem:[%s175] sm:$0xff] %v244
        %293 = vst [vmem:[%s175 + $0x8] sm:$0xff] %v245
        %294 = vst [vmem:[%s175 + $0x10] sm:$0xff] %v246
        %295 = vst [vmem:[%s175 + $0x18] sm:$0xff] %v247
        %296 = vst [vmem:[%s175 + $0x20] sm:$0xff] %v248
        %297 = vst [vmem:[%s175 + $0x28] sm:$0xff] %v249
        %298 = vst [vmem:[%s175 + $0x30] sm:$0xff] %v250
        %299 = vst [vmem:[%s175 + $0x38] sm:$0xff] %v251
        %300 = vst [vmem:[%s175 + $0x40] sm:$0xff] %v252
        %301 = vst [vmem:[%s175 + $0x48] sm:$0xff] %v253
        %302 = vst [vmem:[%s175 + $0x50] sm:$0xff] %v254
        %303 = vst [vmem:[%s175 + $0x58] sm:$0xff] %v255
        %304 = vst [vmem:[%s175 + $0x60] sm:$0xff] %v256
        %305 = vst [vmem:[%s175 + $0x68] sm:$0xff] %v257
        %306 = vst [vmem:[%s175 + $0x70] sm:$0xff] %v258
        %307 = vst [vmem:[%s175 + $0x78] sm:$0xff] %v259
        %308 = vst [vmem:[%s175 + $0x80] sm:$0xff] %v260
        %309 = vst [vmem:[%s175 + $0x88] sm:$0xff] %v261
        %310 = vst [vmem:[%s175 + $0x90] sm:$0xff] %v262
        %311 = vst [vmem:[%s175 + $0x98] sm:$0xff] %v263
        %312 = vst [vmem:[%s175 + $0xa0] sm:$0xff] %v264
        %313 = vst [vmem:[%s175 + $0xa8] sm:$0xff] %v265
        %314 = vst [vmem:[%s175 + $0xb0] sm:$0xff] %v266
        %315 = vst [vmem:[%s175 + $0xb8] sm:$0xff] %v267
        %316 = vst [vmem:[%s175 + $0xc0] sm:$0xff] %v268
        %317 = vst [vmem:[%s175 + $0xc8] sm:$0xff] %v269
        %318 = vst [vmem:[%s175 + $0xd0] sm:$0xff] %v270
        %319 = vst [vmem:[%s175 + $0xd8] sm:$0xff] %v271
        %320 = vst [vmem:[%s175 + $0xe0] sm:$0xff] %v272
        %321 = vst [vmem:[%s175 + $0xe8] sm:$0xff] %v273
        %322 = vst [vmem:[%s175 + $0xf0] sm:$0xff] %v274
        %323 = vst [vmem:[%s175 + $0xf8] sm:$0xff] %v275
        %324 = vst [vmem:[%s175 + $0x100] sm:$0xff] %v276
        %325 = vst [vmem:[%s175 + $0x108] sm:$0xff] %v277
        %326 = vst [vmem:[%s175 + $0x110] sm:$0xff] %v278
        %327 = vst [vmem:[%s175 + $0x118] sm:$0xff] %v279
        %328 = vst [vmem:[%s175 + $0x120] sm:$0xff] %v280
        %329 = vst [vmem:[%s175 + $0x128] sm:$0xff] %v281
        %330 = vst [vmem:[%s175 + $0x130] sm:$0xff] %v282
        %331 = vst [vmem:[%s175 + $0x138] sm:$0xff] %v283
        %332 = vst [vmem:[%s175 + $0x140] sm:$0xff] %v284
        %333 = vst [vmem:[%s175 + $0x148] sm:$0xff] %v285
        %334 = vst [vmem:[%s175 + $0x150] sm:$0xff] %v286
        %335 = vst [vmem:[%s175 + $0x158] sm:$0xff] %v287
        %336 = vst [vmem:[%s175 + $0x160] sm:$0xff] %v288
        %337 = vst [vmem:[%s175 + $0x168] sm:$0xff] %v289
        %338 = vst [vmem:[%s175 + $0x170] sm:$0xff] %v290
        %339 = vst [vmem:[%s175 + $0x178] sm:$0xff] %v291
        %s340 = sand.u32 %s75, 1
        %s341 = scalar_lea.sflag [#allocation4], %s340
        %s342 = sand.u32 %s75, 1
        %s343 = smul.addr %s342, 384
        %s344 = scalar_lea.vmem [#allocation7], %s343
        // Predicated region
        $region37: #{tpu_custom_call.1} parent=27 // pred_check
          %p345 = pneg %p85
        $region38: #{tpu_custom_call.1} parent=27 // pred_check_branch
          %347 = sbr.rel (%p345) target = $region40
        $region39: #{tpu_custom_call.1} parent=27 // pred_region
          %s348 = smul.u32 16, %s20
          %s350 = ssub.s32 6144, 6144
          %351 = vsyncadd %s341, %s350
          %s352 = smul.addr %s348, 3
          %s353 = smul.addr %s352, 128
          %s354 = scalar_lea.hbm %s2, %s353
          %s355 = sshll.u32 %s344, 4
          %s356 = int_to_ptr.vmem [resolvable:$true] %s355
          %361 = dma.vmem_to_hbm [thread:$0]  %s356, 6144, %s354, %s341, 384, 384, 24
        $region40: #{tpu_custom_call.1} parent=27 // pred_fallthru
          _
      $region28: #{tpu_custom_call.1} parent=5 // pred_fallthru
        _
      %p362 = scmp.le.s32.totalorder 2, %s15
      // Predicated region
      $region41: #{tpu_custom_call.1} parent=5 // pred_check
        %p363 = pneg %p362
      $region42: #{tpu_custom_call.1} parent=5 // pred_check_branch
        %365 = sbr.rel (%p363) target = $region44
      $region43: #{tpu_custom_call.1} parent=5 // pred_region
        %s366 = ssub.s32 %s15, 2
        // Predicated region
        $region45: #{tpu_custom_call.1} parent=43 // pred_check
          %p367 = pneg %p91
        $region46: #{tpu_custom_call.1} parent=43 // pred_check_branch
          %369 = sbr.rel (%p367) target = $region48
        $region47: #{tpu_custom_call.1} parent=43 // pred_region
          %s370 = sand.u32 %s76, 1
          %s371 = scalar_lea.sflag [#allocation4], %s370
          %s372 = sand.u32 %s76, 1
          %s373 = smul.addr %s372, 384
          %s374 = scalar_lea.vmem [#allocation7], %s373
          %375 = dma.done %s371, 6144
        $region48: #{tpu_custom_call.1} parent=43 // pred_fallthru
          _
      $region44: #{tpu_custom_call.1} parent=5 // pred_fallthru
        _
    $region6: #{tpu_custom_call.1} parent=1 // loop_footer
      %s19 = sadd.s32 1, %s15
    $region7: #{tpu_custom_call.1} parent=1 // loop_footer_branch
      %14 = sbr.rel target = $region3
    $region8: #{tpu_custom_call.1} parent=1 // loop_exit
      _
    %376 = vsyncpa [#allocation3], 1
    %s377 = scalar_lea.sflag [#allocation3], 1
    %378 = vsyncpa %s377, 1
    %379 = vsyncpa [#allocation6], 1
    %s380 = scalar_lea.sflag [#allocation6], 1
    %381 = vsyncpa %s380, 1
    %382 = vsyncpa [#allocation4], 1
    %s383 = scalar_lea.sflag [#allocation4], 1
    %384 = vsyncpa %s383, 1

</llo_original>
